<compile_context>
chip_gen: v5e
topology: v5e:2x2
jax: 0.10.0
libtpu: 0.0.40
codegen_flags: <defaults>
</compile_context>

<pallas_src>
import functools
import math

import numpy as np
import jax
import jax.numpy as jnp
from jax.experimental import pallas as pl
from jax.experimental.pallas import tpu as pltpu


# ----------------------------------------------------------------------------
# exact torch.nn.AdaptiveAvgPool2d window matrix (1-D, separable)
# ----------------------------------------------------------------------------
def _adaptive_pool_matrix(in_size: int, out_size: int) -> np.ndarray:
    """P[i, j] = 1/len(window_i) if j in window_i else 0 (PyTorch windows)."""
    P = np.zeros((out_size, in_size), dtype=np.float32)
    for i in range(out_size):
        s = (i * in_size) // out_size
        e = -((-((i + 1) * in_size)) // out_size)  # ceil((i+1)*in/out)
        P[i, s:e] = 1.0 / (e - s)
    return P


# ----------------------------------------------------------------------------
# kernel: for each batch in the block, pooled = M @ x   (short unrolled loop of
# MXU dots; avoids the (o,b,c)->(b,o,c) transpose an einsum would introduce)
# ----------------------------------------------------------------------------
def _token_down_kernel(m_ref, x_ref, o_ref):
    # m_ref: (n_out, T)   x_ref: (Bb, T, tc)   o_ref: (Bb, n_out, tc)
    m = m_ref[...]
    for i in range(x_ref.shape[0]):  # Bb is small and static
        o_ref[i] = jnp.dot(
            m, x_ref[i], preferred_element_type=jnp.float32
        ).astype(o_ref.dtype)


# ----------------------------------------------------------------------------
# generation-aware block chooser
# ----------------------------------------------------------------------------
def _choose_blocks(B, T, C, n_out, itemsize, m_itemsize):
    try:
        capacity = int(pltpu.get_tpu_info().vmem_capacity_bytes)
    except Exception:
        capacity = 64 << 20  # conservative (v7x-sized) fallback
    budget = min((capacity * 2) // 5, 48 << 20)        # ~40% of physical, <=48 MiB
    vmem_limit = int(min((capacity * 3) // 4, 100 << 20))

    def footprint(bb, tc):
        x_blk = bb * T * tc * itemsize          # double-buffered input block
        o_blk = bb * n_out * tc * itemsize      # double-buffered output block
        f32_tmp = bb * n_out * tc * 4           # matmul result before .astype
        m_blk = n_out * T * m_itemsize          # pool matrix (resident)
        return 2 * x_blk + 2 * o_blk + f32_tmp + 2 * m_blk

    # channel tiles: largest first (full C preferred -> contiguous DMA rows)
    tcs = sorted((d for d in range(128, C + 1, 128) if C % d == 0), reverse=True)
    if not tcs:
        tcs = [C]
    b_divs = [d for d in range(1, B + 1) if B % d == 0]  # ascending

    target_x = 2 << 20  # ~2 MiB x block amortizes the ~0.35us per-step overhead
    bb, tc = 1, tcs[-1]
    for tc_cand in tcs:
        fitting = [d for d in b_divs if footprint(d, tc_cand) <= budget]
        if not fitting:
            continue
        bb_cand = fitting[-1]              # largest fitting batch block
        for d in fitting:                  # smallest bb that already hits target
            if d * T * tc_cand * itemsize >= target_x:
                bb_cand = d
                break
        bb, tc = bb_cand, tc_cand
        break

    # keep >= 2 grid steps so both v7x TensorCores (parallel axes) get work
    if (B // bb) * (C // tc) < 2:
        if bb > 1:
            bb = max(d for d in b_divs if d < B)
        elif tc == C and C % 256 == 0:
            tc = C // 2

    return bb, tc, vmem_limit


# ----------------------------------------------------------------------------
# wrapper
# ----------------------------------------------------------------------------
@functools.partial(jax.jit, static_argnames=("out_hw",))
def token_down_forward(x, out_hw: int = 14):
    B, T, C = x.shape
    h = int(math.isqrt(T))
    assert h * h == T, "num_tokens must be a perfect square"
    n_out = out_hw * out_hw

    # exact PyTorch adaptive-pool windows, separable -> single kron matrix
    P = _adaptive_pool_matrix(h, out_hw)
    M_np = np.kron(P, P).astype(np.float32)           # (n_out, T)

    # cast M to the input dtype only when exactly representable (keeps bf16
    # inputs on the fast MXU path without rounding the pool weights)
    x_dt = np.dtype(x.dtype)
    if x_dt != np.float32:
        M_lo = M_np.astype(x_dt)
        if np.array_equal(M_lo.astype(np.float32), M_np):
            M_np = M_lo
    M = jnp.asarray(M_np)

    # pad C to a multiple of 128 -> unmasked lane-dense loads/stores
    C_pad = ((C + 127) // 128) * 128
    x_in = x if C_pad == C else jnp.pad(x, ((0, 0), (0, 0), (0, C_pad - C)))

    itemsize = np.dtype(x.dtype).itemsize
    bb, tc, vmem_limit = _choose_blocks(
        B, T, C_pad, n_out, itemsize, M.dtype.itemsize
    )
    grid = (B // bb, C_pad // tc)

    cost = pl.CostEstimate(
        flops=2 * B * n_out * T * C_pad,
        transcendentals=0,
        bytes_accessed=B * T * C_pad * itemsize
        + n_out * T * M.dtype.itemsize
        + B * n_out * C_pad * itemsize,
    )

    out = pl.pallas_call(
        _token_down_kernel,
        out_shape=jax.ShapeDtypeStruct((B, n_out, C_pad), x.dtype),
        grid_spec=pltpu.PrefetchScalarGridSpec(
            num_scalar_prefetch=0,
            grid=grid,
            in_specs=[
                pl.BlockSpec((n_out, T), lambda b, c: (0, 0)),       # resident
                pl.BlockSpec((bb, T, tc), lambda b, c: (b, 0, c)),
            ],
            out_specs=pl.BlockSpec((bb, n_out, tc), lambda b, c: (b, 0, c)),
        ),
        compiler_params=pltpu.CompilerParams(
            dimension_semantics=("parallel", "parallel"),
            vmem_limit_bytes=vmem_limit,
        ),
        cost_estimate=cost,
    )(M, x_in)

    return out if C_pad == C else out[:, :, :C]


# ----------------------------------------------------------------------------
# pure-JAX reference for correctness
# ----------------------------------------------------------------------------
def reference_forward(x, out_hw: int = 14):
    B, T, C = x.shape
    h = int(math.isqrt(T))
    P = jnp.asarray(_adaptive_pool_matrix(h, out_hw))
    feat = x.reshape(B, h, h, C)                      # token t -> (t // h, t % h)
    feat = jnp.einsum("ip,bpqc->biqc", P, feat)
    feat = jnp.einsum("jq,biqc->bijc", P, feat)
    return feat.reshape(B, out_hw * out_hw, C)


if __name__ == "__main__":
    key = jax.random.PRNGKey(0)

    # small shapes consistent with the module: 16x16 token grid, lane-dense C
    B, h, C, out_hw = 2, 16, 128, 14
    T = h * h
    x = jax.random.normal(key, (B, T, C), jnp.float32)

    out = token_down_forward(x, out_hw=out_hw)
    out = jax.block_until_ready(out)

    ref = reference_forward(x, out_hw=out_hw)
    assert out.shape == (B, out_hw * out_hw, C), out.shape
    np.testing.assert_allclose(np.asarray(out), np.asarray(ref), rtol=1e-5, atol=1e-5)
    print("KERNEL_OK")
</pallas_src>

<mosaic_0001>
module attributes {stable_mosaic.version = 11 : i64} {
  func.func @_token_down_kernel(%arg0: i32, %arg1: i32, %arg2: memref<196x256xf32, #tpu.memory_space<vmem>>, %arg3: memref<1x256x128xf32, #tpu.memory_space<vmem>>, %arg4: memref<1x196x128xf32, #tpu.memory_space<vmem>>) attributes {dimension_semantics = [#tpu.dimension_semantics<parallel>, #tpu.dimension_semantics<parallel>], iteration_bounds = array<i64: 2, 1>, scalar_prefetch = 0 : i64, scratch_operands = 0 : i64, tpu.core_type = #tpu.core_type<tc>, window_params = [{pipeline_mode = #tpu.pipeline_mode<synchronous>, transform_indices = @transform_0, window_bounds = array<i64: 196, 256>}, {transform_indices = @transform_1, window_bounds = array<i64: 1, 256, 128>}, {transform_indices = @transform_2, window_bounds = array<i64: 1, 196, 128>}]} {
    %c0 = arith.constant 0 : index
    %c0_0 = arith.constant 0 : index
    %0 = vector.load %arg2[%c0, %c0_0] : memref<196x256xf32, #tpu.memory_space<vmem>>, vector<196x256xf32>
    %c0_1 = arith.constant 0 : index
    %c0_2 = arith.constant 0 : index
    %c0_3 = arith.constant 0 : index
    %1 = vector.load %arg3[%c0_1, %c0_2, %c0_3] : memref<1x256x128xf32, #tpu.memory_space<vmem>>, vector<1x256x128xf32>
    %2 = vector.shape_cast %1 : vector<1x256x128xf32> to vector<256x128xf32>
    %cst = arith.constant dense<0.000000e+00> : vector<196x128xf32>
    %3 = tpu.matmul %0, %2, %cst {dimension_numbers = #tpu.dot_dimension_numbers<[1], [0], [0], [1], [0, 0, 1, 1], [], []>} : vector<196x256xf32>, vector<256x128xf32>, vector<196x128xf32> -> vector<196x128xf32>
    %c0_4 = arith.constant 0 : index
    %c0_5 = arith.constant 0 : index
    %c0_6 = arith.constant 0 : index
    %4 = vector.load %arg4[%c0_4, %c0_5, %c0_6] : memref<1x196x128xf32, #tpu.memory_space<vmem>>, vector<1x196x128xf32>
    %5 = vector.shape_cast %4 : vector<1x196x128xf32> to vector<196x128xf32>
    %6 = vector.shape_cast %3 : vector<196x128xf32> to vector<1x196x128xf32>
    tpu.vector_store %arg4[%c0_4, %c0_5, %c0_6], %6 {strides = array<i32>} : memref<1x196x128xf32, #tpu.memory_space<vmem>>, vector<1x196x128xf32>,
    return
  }
  func.func @transform_0(%arg0: i32, %arg1: i32) -> (i32, i32) {
    %c0_i32 = arith.constant 0 : i32
    %c0_i32_0 = arith.constant 0 : i32
    %c0_i32_1 = arith.constant 0 : i32
    return %c0_i32, %c0_i32_0 : i32, i32
  }
  func.func @transform_1(%arg0: i32, %arg1: i32) -> (i32, i32, i32) {
    %c0_i32 = arith.constant 0 : i32
    %c0_i32_0 = arith.constant 0 : i32
    return %arg0, %c0_i32, %arg1 : i32, i32, i32
  }
  func.func @transform_2(%arg0: i32, %arg1: i32) -> (i32, i32, i32) {
    %c0_i32 = arith.constant 0 : i32
    %c0_i32_0 = arith.constant 0 : i32
    return %arg0, %c0_i32, %arg1 : i32, i32, i32
  }
}

</mosaic_0001>

<llo_original>
// kernel: token_down_forward.1
$region0: #{token_down_forward.1}
  #allocation0 [shape = 'u32[]', space=smem, size = 0x4, offset = 0x4, fixed_abs, tag = 'smem constant byte address 0x4 - core index']
  #allocation1 [shape = 'u32[72,128]{1,0:T(1,128)}', space=vmem, size = 0x9000, scoped, tag = 'internal scratch']
  %s0 = inlined_call_operand.hbm [shape: f32[196,256], index: 0, kind: input, shape index: {}]
  %s1 = inlined_call_operand.hbm [shape: f32[2,256,128], index: 1, kind: input, shape index: {}]
  %s2 = inlined_call_operand.vmem [shape: f32[2,196,128], index: 2, kind: output, shape index: {}]
  %s3 = sld [smem:[#allocation0]]
  $region49: #{token_down_forward.1} parent=0
    _
  %s5 = ssub.s32 1, %s3
  %s6 = scalar_select 0, %s5, %s3
  $region1: #{token_down_forward.1} parent=0
    #allocation2 [shape = 'u8[204800]{0}', space=vmem, size = 0x32000, scoped, tag = 'input window, operand 0, single buffered']
    #allocation3 [shape = 's32[2]{0}', space=sflag, size = 0x8, scoped, tag = 'scoped memory for token_down_forward.1']
    #allocation4 [shape = 'u8[262144]{0}', space=vmem, size = 0x40000, scoped, tag = 'input window, operand 1']
    #allocation5 [shape = 's32[2]{0}', space=sflag, size = 0x8, scoped, tag = 'scoped memory for token_down_forward.1']
    %7 = vsyncpa [#allocation3], 0
    %8 = vsyncpa [#allocation5], 0
    %s9 = scalar_lea.sflag [#allocation5], 1
    %10 = vsyncpa %s9, 0
    loop: start=0, step=1, limit=4
    $region2: #{token_down_forward.1} parent=1 // loop_pre_header
      _
    $region3: #{token_down_forward.1} parent=1 // loop_header
      %s12 = sphi 0, %s16
      %p13 = scmp.ge.s32.totalorder %s12, 4
      %s19 = sphi 0, %s31
      %s20 = sphi 0, %s27
      %s21 = sphi 0, %s19
      %s22 = sphi 0, %s20
      %s23 = sphi 0, %s21
      %s24 = sphi 0, %s22
      %s32 = sphi 0, %s32
      %s34 = sphi 0, %s32
      %s35 = sphi 0, %s34
      %s49 = sphi 0, %s35
      %s57 = sphi 0, %s59
      %s60 = sphi 0, %s57
      %s61 = sphi 0, %s60
      %s77 = sphi 0, %s61
      %s85 = sphi 0, %s87
      %s88 = sphi 0, %s85
      %s89 = sphi 0, %s88
      %s105 = sphi 0, %s89
    $region4: #{token_down_forward.1} parent=1 // loop_header_branch
      %15 = sbr.rel (%p13) target = $region8
    $region5: #{token_down_forward.1} parent=1 // loop_body
      %s17 = ssub.s32 %s12, 1
      %s18 = ssub.s32 %s12, 2
      %s25 = sadd.s32 1, %s20
      %p26 = scmp.ge.s32.totalorder %s25, 1
      %s27 = scalar_select %p26, 0, %s25
      %s28 = sadd.s32 1, %s19
      %s29 = scalar_select %p26, %s28, %s19
      %p30 = scmp.ge.s32.totalorder %s29, 2
      %s31 = scalar_select %p30, 0, %s29
      %s33 = sadd.s32 %s32, 1
      %p36 = scmp.eq.s32.totalorder %s12, 1
      %p37 = scmp.ne.s32.totalorder %s32, %s34
      %p38 = scmp.eq.s32.totalorder %s12, 0
      %p39 = por %p37, %p38
      %p40 = scmp.ne.s32.totalorder %s32, %s34
      %p41 = scmp.eq.s32.totalorder %s17, 1
      %p42 = por %p40, %p41
      %p43 = scmp.ne.s32.totalorder %s34, %s35
      %p44 = scmp.eq.s32.totalorder %s17, 0
      %p45 = por %p43, %p44
      %p46 = scmp.ne.s32.totalorder %s34, %s35
      %p47 = scmp.eq.s32.totalorder %s18, 1
      %p48 = por %p46, %p47
      %p50 = scmp.ne.s32.totalorder %s35, %s49
      %p51 = scmp.eq.s32.totalorder %s18, 0
      %p52 = por %p50, %p51
      %s53 = ssub.s32 %s19, %s31
      %s54 = ssub.s32 %s20, %s27
      %s55 = sor.u32 %s53, %s54
      %p56 = scmp.eq.s32.totalorder %s55, 0
      %s58 = sadd.s32 %s57, 1
      %s59 = scalar_select %p56, %s57, %s58
      %p62 = pneg %p56
      %p63 = scmp.eq.s32.totalorder %s12, 1
      %p64 = por %p62, %p63
      %p65 = scmp.ne.s32.totalorder %s57, %s60
      %p66 = scmp.eq.s32.totalorder %s12, 0
      %p67 = por %p65, %p66
      %p68 = scmp.ne.s32.totalorder %s57, %s60
      %p69 = scmp.eq.s32.totalorder %s17, 1
      %p70 = por %p68, %p69
      %p71 = scmp.ne.s32.totalorder %s60, %s61
      %p72 = scmp.eq.s32.totalorder %s17, 0
      %p73 = por %p71, %p72
      %p74 = scmp.ne.s32.totalorder %s60, %s61
      %p75 = scmp.eq.s32.totalorder %s18, 1
      %p76 = por %p74, %p75
      %p78 = scmp.ne.s32.totalorder %s61, %s77
      %p79 = scmp.eq.s32.totalorder %s18, 0
      %p80 = por %p78, %p79
      %s81 = ssub.s32 %s19, %s31
      %s82 = ssub.s32 %s20, %s27
      %s83 = sor.u32 %s81, %s82
      %p84 = scmp.eq.s32.totalorder %s83, 0
      %s86 = sadd.s32 %s85, 1
      %s87 = scalar_select %p84, %s85, %s86
      %p90 = pneg %p84
      %p91 = scmp.eq.s32.totalorder %s12, 1
      %p92 = por %p90, %p91
      %p93 = scmp.ne.s32.totalorder %s85, %s88
      %p94 = scmp.eq.s32.totalorder %s12, 0
      %p95 = por %p93, %p94
      %p96 = scmp.ne.s32.totalorder %s85, %s88
      %p97 = scmp.eq.s32.totalorder %s17, 1
      %p98 = por %p96, %p97
      %p99 = scmp.ne.s32.totalorder %s88, %s89
      %p100 = scmp.eq.s32.totalorder %s17, 0
      %p101 = por %p99, %p100
      %p102 = scmp.ne.s32.totalorder %s88, %s89
      %p103 = scmp.eq.s32.totalorder %s18, 1
      %p104 = por %p102, %p103
      %p106 = scmp.ne.s32.totalorder %s89, %s105
      %p107 = scmp.eq.s32.totalorder %s18, 0
      %p108 = por %p106, %p107
      %p109 = scmp.le.s32.totalorder 1, %s12
      %p110 = scmp.lt.s32.totalorder %s12, 3
      %p111 = pnand %p109, %p110
      %p112 = pneg %p111
      // Predicated region
      $region9: #{token_down_forward.1} parent=5 // pred_check
        _
      $region10: #{token_down_forward.1} parent=5 // pred_check_branch
        %114 = sbr.rel (%p111) target = $region12
      $region11: #{token_down_forward.1} parent=5 // pred_region
        %s115 = ssub.s32 %s12, 1
        // Predicated region
        $region13: #{token_down_forward.1} parent=11 // pred_check
          %p116 = pneg %p45
        $region14: #{token_down_forward.1} parent=11 // pred_check_branch
          %118 = sbr.rel (%p116) target = $region16
        $region15: #{token_down_forward.1} parent=11 // pred_region
          %120 = vsyncadd [#allocation3], 0
          %s121 = sshll.u32 %s0, 4
          %s122 = int_to_ptr.hbm [resolvable:$true] %s121
          %s123 = sshll.u32 [#allocation2], 4
          %s124 = int_to_ptr.vmem [resolvable:$true] %s123
          %129 = dma.hbm_to_vmem [thread:$0]  %s122, 6400, %s124, [#allocation3], 256, 256, 16
        $region16: #{token_down_forward.1} parent=11 // pred_fallthru
          _
      $region12: #{token_down_forward.1} parent=5 // pred_fallthru
        _
      %p130 = scmp.lt.s32.totalorder %s12, 2
      // Predicated region
      $region17: #{token_down_forward.1} parent=5 // pred_check
        %p131 = pneg %p130
      $region18: #{token_down_forward.1} parent=5 // pred_check_branch
        %133 = sbr.rel (%p131) target = $region20
      $region19: #{token_down_forward.1} parent=5 // pred_region
        // Predicated region
        $region21: #{token_down_forward.1} parent=19 // pred_check
          %p134 = pneg %p67
        $region22: #{token_down_forward.1} parent=19 // pred_check_branch
          %136 = sbr.rel (%p134) target = $region24
        $region23: #{token_down_forward.1} parent=19 // pred_region
          %s137 = sand.u32 %s57, 1
          %s138 = scalar_lea.sflag [#allocation5], %s137
          %s139 = sand.u32 %s57, 1
          %s140 = smul.addr %s139, 256
          %s141 = scalar_lea.vmem [#allocation4], %s140
          %143 = vsyncadd %s138, 0
          %s144 = smul.addr %s19, 32
          %s145 = sadd.s32 %s20, %s144
          %s146 = smul.addr %s145, 8
          %s147 = scalar_lea.hbm %s1, %s146
          %s148 = sshll.u32 %s147, 4
          %s149 = int_to_ptr.hbm [resolvable:$true] %s148
          %s150 = sshll.u32 %s141, 4
          %s151 = int_to_ptr.vmem [resolvable:$true] %s150
          %156 = dma.hbm_to_vmem [thread:$0]  %s149, 4096, %s151, %s138, 128, 128, 8
        $region24: #{token_down_forward.1} parent=19 // pred_fallthru
          _
      $region20: #{token_down_forward.1} parent=5 // pred_fallthru
        _
      %p157 = scmp.le.s32.totalorder 1, %s12
      %p158 = scmp.lt.s32.totalorder %s12, 3
      %p159 = pnand %p157, %p158
      %p160 = pneg %p159
      // Predicated region
      $region25: #{token_down_forward.1} parent=5 // pred_check
        _
      $region26: #{token_down_forward.1} parent=5 // pred_check_branch
        %162 = sbr.rel (%p159) target = $region28
      $region27: #{token_down_forward.1} parent=5 // pred_region
        %s163 = ssub.s32 %s12, 1
        // Predicated region
        $region29: #{token_down_forward.1} parent=27 // pred_check
          %p164 = pneg %p45
        $region30: #{token_down_forward.1} parent=27 // pred_check_branch
          %166 = sbr.rel (%p164) target = $region32
        $region31: #{token_down_forward.1} parent=27 // pred_region
          %168 = dma.done [#allocation3], 6400
        $region32: #{token_down_forward.1} parent=27 // pred_fallthru
          _
        %s169 = sand.u32 %s60, 1
        %s170 = scalar_lea.sflag [#allocation5], %s169
        %s171 = sand.u32 %s60, 1
        %s172 = smul.addr %s171, 256
        %s173 = scalar_lea.vmem [#allocation4], %s172
        // Predicated region
        $region33: #{token_down_forward.1} parent=27 // pred_check
          %p174 = pneg %p73
        $region34: #{token_down_forward.1} parent=27 // pred_check_branch
          %176 = sbr.rel (%p174) target = $region36
        $region35: #{token_down_forward.1} parent=27 // pred_region
          %178 = dma.done %s170, 4096
        $region36: #{token_down_forward.1} parent=27 // pred_fallthru
          _
        %p179 = pneg %p45
        %p180 = pneg %p42
        %s181 = sand.u32 %s60, 1
        %s182 = scalar_lea.sflag [#allocation5], %s181
        %s183 = sand.u32 %s60, 1
        %s184 = smul.addr %s183, 256
        %s185 = scalar_lea.vmem [#allocation4], %s184
        %p186 = pneg %p73
        %p187 = pneg %p70
        %p188 = pneg %p101
        %p189 = pneg %p98
        %p190 = scmp.lt.s32.totalorder %s21, 1
        %s191 = scalar_select %p190, %s21, 1
        %p192 = scmp.lt.s32.totalorder %s22, 0
        %s193 = scalar_select %p192, %s22, 0
        %s194 = smul.addr %s191, 25
        %s195 = sadd.s32 %s193, %s194
        %s196 = smul.addr %s195, 8
        %s197 = scalar_lea.vmem %s2, %s196
        %p198 = scmp.lt.s32.totalorder %s21, 1
        %s199 = scalar_select %p198, %s21, 1
        %p200 = scmp.lt.s32.totalorder %s22, 0
        %s201 = scalar_select %p200, %s22, 0
        %s202 = smul.addr %s199, 25
        %s203 = sadd.s32 %s201, %s202
        %s204 = smul.addr %s203, 8
        %s205 = scalar_lea.vmem %s2, %s204
        %v206 = vld [vmem:[#allocation2] sm:$0xff]
        %v207 = vld [vmem:[#allocation2 + $0x8] sm:$0xff]
        %v208 = vld [vmem:[#allocation2 + $0x10] sm:$0xff]
        %v209 = vld [vmem:[#allocation2 + $0x18] sm:$0xff]
        %v210 = vld [vmem:[#allocation2 + $0x20] sm:$0xff]
        %v211 = vld [vmem:[#allocation2 + $0x28] sm:$0xff]
        %v212 = vld [vmem:[#allocation2 + $0x30] sm:$0xff]
        %v213 = vld [vmem:[#allocation2 + $0x38] sm:$0xff]
        %v214 = vld [vmem:[#allocation2 + $0x40] sm:$0xff]
        %v215 = vld [vmem:[#allocation2 + $0x48] sm:$0xff]
        %v216 = vld [vmem:[#allocation2 + $0x50] sm:$0xff]
        %v217 = vld [vmem:[#allocation2 + $0x58] sm:$0xff]
        %v218 = vld [vmem:[#allocation2 + $0x60] sm:$0xff]
        %v219 = vld [vmem:[#allocation2 + $0x68] sm:$0xff]
        %v220 = vld [vmem:[#allocation2 + $0x70] sm:$0xff]
        %v221 = vld [vmem:[#allocation2 + $0x78] sm:$0xff]
        %v222 = vld [vmem:[#allocation2 + $0x80] sm:$0xff]
        %v223 = vld [vmem:[#allocation2 + $0x88] sm:$0xff]
        %v224 = vld [vmem:[#allocation2 + $0x90] sm:$0xff]
        %v225 = vld [vmem:[#allocation2 + $0x98] sm:$0xff]
        %v226 = vld [vmem:[#allocation2 + $0xa0] sm:$0xff]
        %v227 = vld [vmem:[#allocation2 + $0xa8] sm:$0xff]
        %v228 = vld [vmem:[#allocation2 + $0xb0] sm:$0xff]
        %v229 = vld [vmem:[#allocation2 + $0xb8] sm:$0xff]
        %v230 = vld [vmem:[#allocation2 + $0xc0] sm:$0xff]
        %v231 = vld [vmem:[#allocation2 + $0xc8] sm:$0xff]
        %v232 = vld [vmem:[#allocation2 + $0xd0] sm:$0xff]
        %v233 = vld [vmem:[#allocation2 + $0xd8] sm:$0xff]
        %v234 = vld [vmem:[#allocation2 + $0xe0] sm:$0xff]
        %v235 = vld [vmem:[#allocation2 + $0xe8] sm:$0xff]
        %v236 = vld [vmem:[#allocation2 + $0xf0] sm:$0xff]
        %v237 = vld [vmem:[#allocation2 + $0xf8] sm:$0xff]
        %v238 = vld [vmem:[#allocation2 + $0x100] sm:$0xff]
        %v239 = vld [vmem:[#allocation2 + $0x108] sm:$0xff]
        %v240 = vld [vmem:[#allocation2 + $0x110] sm:$0xff]
        %v241 = vld [vmem:[#allocation2 + $0x118] sm:$0xff]
        %v242 = vld [vmem:[#allocation2 + $0x120] sm:$0xff]
        %v243 = vld [vmem:[#allocation2 + $0x128] sm:$0xff]
        %v244 = vld [vmem:[#allocation2 + $0x130] sm:$0xff]
        %v245 = vld [vmem:[#allocation2 + $0x138] sm:$0xff]
        %v246 = vld [vmem:[#allocation2 + $0x140] sm:$0xff]
        %v247 = vld [vmem:[#allocation2 + $0x148] sm:$0xff]
        %v248 = vld [vmem:[#allocation2 + $0x150] sm:$0xff]
        %v249 = vld [vmem:[#allocation2 + $0x158] sm:$0xff]
        %v250 = vld [vmem:[#allocation2 + $0x160] sm:$0xff]
        %v251 = vld [vmem:[#allocation2 + $0x168] sm:$0xff]
        %v252 = vld [vmem:[#allocation2 + $0x170] sm:$0xff]
        %v253 = vld [vmem:[#allocation2 + $0x178] sm:$0xff]
        %v254 = vld [vmem:[#allocation2 + $0x180] sm:$0xf]
        %v255 = vld [vmem:[#allocation2 + $0x188] sm:$0xf]
        %v256 = vld [vmem:[%s173] sm:$0xff]
        %v257 = vld [vmem:[%s173 + $0x8] sm:$0xff]
        %v258 = vld [vmem:[%s173 + $0x10] sm:$0xff]
        %v259 = vld [vmem:[%s173 + $0x18] sm:$0xff]
        %v260 = vld [vmem:[%s173 + $0x20] sm:$0xff]
        %v261 = vld [vmem:[%s173 + $0x28] sm:$0xff]
        %v262 = vld [vmem:[%s173 + $0x30] sm:$0xff]
        %v263 = vld [vmem:[%s173 + $0x38] sm:$0xff]
        %v264 = vld [vmem:[%s173 + $0x40] sm:$0xff]
        %v265 = vld [vmem:[%s173 + $0x48] sm:$0xff]
        %v266 = vld [vmem:[%s173 + $0x50] sm:$0xff]
        %v267 = vld [vmem:[%s173 + $0x58] sm:$0xff]
        %v268 = vld [vmem:[%s173 + $0x60] sm:$0xff]
        %v269 = vld [vmem:[%s173 + $0x68] sm:$0xff]
        %v270 = vld [vmem:[%s173 + $0x70] sm:$0xff]
        %v271 = vld [vmem:[%s173 + $0x78] sm:$0xff]
        %v272 = vld [vmem:[%s173 + $0x80] sm:$0xff]
        %v273 = vld [vmem:[%s173 + $0x88] sm:$0xff]
        %v274 = vld [vmem:[%s173 + $0x90] sm:$0xff]
        %v275 = vld [vmem:[%s173 + $0x98] sm:$0xff]
        %v276 = vld [vmem:[%s173 + $0xa0] sm:$0xff]
        %v277 = vld [vmem:[%s173 + $0xa8] sm:$0xff]
        %v278 = vld [vmem:[%s173 + $0xb0] sm:$0xff]
        %v279 = vld [vmem:[%s173 + $0xb8] sm:$0xff]
        %v280 = vld [vmem:[%s173 + $0xc0] sm:$0xff]
        %v281 = vld [vmem:[%s173 + $0xc8] sm:$0xff]
        %v282 = vld [vmem:[%s173 + $0xd0] sm:$0xff]
        %v283 = vld [vmem:[%s173 + $0xd8] sm:$0xff]
        %v284 = vld [vmem:[%s173 + $0xe0] sm:$0xff]
        %v285 = vld [vmem:[%s173 + $0xe8] sm:$0xff]
        %v286 = vld [vmem:[%s173 + $0xf0] sm:$0xff]
        %v287 = vld [vmem:[%s173 + $0xf8] sm:$0xff]
        %288 = vmatpush.msra.mxu0 %v271
        %289 = vmatpush.msra.mxu0 %v270
        %290 = vmatpush.msra.mxu0 %v269
        %291 = vmatpush.msra.mxu0 %v268
        %292 = vmatpush.msra.mxu0 %v267
        %293 = vmatpush.msra.mxu0 %v266
        %294 = vmatpush.msra.mxu0 %v265
        %295 = vmatpush.msra.mxu0 %v264
        %296 = vmatpush.msra.mxu0 %v263
        %297 = vmatpush.msra.mxu0 %v262
        %298 = vmatpush.msra.mxu0 %v261
        %299 = vmatpush.msra.mxu0 %v260
        %300 = vmatpush.msra.mxu0 %v259
        %301 = vmatpush.msra.mxu0 %v258
        %302 = vmatpush.msra.mxu0 %v257
        %303 = vmatpush.msra.mxu0 %v256
        %304 = vmatmul.f32.gmra.mxu0 %v206
        %v305 = vpop.f32.mrf.mxu0
        %v306 = vadd.f32 0.0, %v305
        %307 = vmatmul.f32.gmra.mxu0 %v208
        %v308 = vpop.f32.mrf.mxu0
        %v309 = vadd.f32 0.0, %v308
        %310 = vmatmul.f32.gmra.mxu0 %v210
        %v311 = vpop.f32.mrf.mxu0
        %v312 = vadd.f32 0.0, %v311
        %313 = vmatmul.f32.gmra.mxu0 %v212
        %v314 = vpop.f32.mrf.mxu0
        %v315 = vadd.f32 0.0, %v314
        %316 = vmatmul.f32.gmra.mxu0 %v214
        %v317 = vpop.f32.mrf.mxu0
        %v318 = vadd.f32 0.0, %v317
        %319 = vmatmul.f32.gmra.mxu0 %v216
        %v320 = vpop.f32.mrf.mxu0
        %v321 = vadd.f32 0.0, %v320
        %322 = vmatmul.f32.gmra.mxu0 %v218
        %v323 = vpop.f32.mrf.mxu0
        %v324 = vadd.f32 0.0, %v323
        %325 = vmatmul.f32.gmra.mxu0 %v220
        %v326 = vpop.f32.mrf.mxu0
        %v327 = vadd.f32 0.0, %v326
        %328 = vmatmul.f32.gmra.mxu0 %v222
        %v329 = vpop.f32.mrf.mxu0
        %v330 = vadd.f32 0.0, %v329
        %331 = vmatmul.f32.gmra.mxu0 %v224
        %v332 = vpop.f32.mrf.mxu0
        %v333 = vadd.f32 0.0, %v332
        %334 = vmatmul.f32.gmra.mxu0 %v226
        %v335 = vpop.f32.mrf.mxu0
        %v336 = vadd.f32 0.0, %v335
        %337 = vmatmul.f32.gmra.mxu0 %v228
        %v338 = vpop.f32.mrf.mxu0
        %v339 = vadd.f32 0.0, %v338
        %340 = vmatmul.f32.gmra.mxu0 %v230
        %v341 = vpop.f32.mrf.mxu0
        %v342 = vadd.f32 0.0, %v341
        %343 = vmatmul.f32.gmra.mxu0 %v232
        %v344 = vpop.f32.mrf.mxu0
        %v345 = vadd.f32 0.0, %v344
        %346 = vmatmul.f32.gmra.mxu0 %v234
        %v347 = vpop.f32.mrf.mxu0
        %v348 = vadd.f32 0.0, %v347
        %349 = vmatmul.f32.gmra.mxu0 %v236
        %v350 = vpop.f32.mrf.mxu0
        %v351 = vadd.f32 0.0, %v350
        %352 = vmatmul.f32.gmra.mxu0 %v238
        %v353 = vpop.f32.mrf.mxu0
        %v354 = vadd.f32 0.0, %v353
        %355 = vmatmul.f32.gmra.mxu0 %v240
        %v356 = vpop.f32.mrf.mxu0
        %v357 = vadd.f32 0.0, %v356
        %358 = vmatmul.f32.gmra.mxu0 %v242
        %v359 = vpop.f32.mrf.mxu0
        %v360 = vadd.f32 0.0, %v359
        %361 = vmatmul.f32.gmra.mxu0 %v244
        %v362 = vpop.f32.mrf.mxu0
        %v363 = vadd.f32 0.0, %v362
        %364 = vmatmul.f32.gmra.mxu0 %v246
        %v365 = vpop.f32.mrf.mxu0
        %v366 = vadd.f32 0.0, %v365
        %367 = vmatmul.f32.gmra.mxu0 %v248
        %v368 = vpop.f32.mrf.mxu0
        %v369 = vadd.f32 0.0, %v368
        %370 = vmatmul.f32.gmra.mxu0 %v250
        %v371 = vpop.f32.mrf.mxu0
        %v372 = vadd.f32 0.0, %v371
        %373 = vmatmul.f32.gmra.mxu0 %v252
        %v374 = vpop.f32.mrf.mxu0
        %v375 = vadd.f32 0.0, %v374
        %376 = vmatmul.f32.gmra.mxu0 %v254
        %v377 = vpop.f32.mrf.mxu0
        %v378 = vadd.f32 0.0, %v377
        %379 = vdwg.mxu0
        %380 = vmatpush.msra.mxu0 %v287
        %381 = vmatpush.msra.mxu0 %v286
        %382 = vmatpush.msra.mxu0 %v285
        %383 = vmatpush.msra.mxu0 %v284
        %384 = vmatpush.msra.mxu0 %v283
        %385 = vmatpush.msra.mxu0 %v282
        %386 = vmatpush.msra.mxu0 %v281
        %387 = vmatpush.msra.mxu0 %v280
        %388 = vmatpush.msra.mxu0 %v279
        %389 = vmatpush.msra.mxu0 %v278
        %390 = vmatpush.msra.mxu0 %v277
        %391 = vmatpush.msra.mxu0 %v276
        %392 = vmatpush.msra.mxu0 %v275
        %393 = vmatpush.msra.mxu0 %v274
        %394 = vmatpush.msra.mxu0 %v273
        %395 = vmatpush.msra.mxu0 %v272
        %396 = vmatmul.f32.gmra.mxu0 %v207
        %v397 = vpop.f32.mrf.mxu0
        %v398 = vadd.f32 %v306, %v397
        %399 = vmatmul.f32.gmra.mxu0 %v209
        %v400 = vpop.f32.mrf.mxu0
        %v401 = vadd.f32 %v309, %v400
        %402 = vmatmul.f32.gmra.mxu0 %v211
        %v403 = vpop.f32.mrf.mxu0
        %v404 = vadd.f32 %v312, %v403
        %405 = vmatmul.f32.gmra.mxu0 %v213
        %v406 = vpop.f32.mrf.mxu0
        %v407 = vadd.f32 %v315, %v406
        %408 = vmatmul.f32.gmra.mxu0 %v215
        %v409 = vpop.f32.mrf.mxu0
        %v410 = vadd.f32 %v318, %v409
        %411 = vmatmul.f32.gmra.mxu0 %v217
        %v412 = vpop.f32.mrf.mxu0
        %v413 = vadd.f32 %v321, %v412
        %414 = vmatmul.f32.gmra.mxu0 %v219
        %v415 = vpop.f32.mrf.mxu0
        %v416 = vadd.f32 %v324, %v415
        %417 = vmatmul.f32.gmra.mxu0 %v221
        %v418 = vpop.f32.mrf.mxu0
        %v419 = vadd.f32 %v327, %v418
        %420 = vmatmul.f32.gmra.mxu0 %v223
        %v421 = vpop.f32.mrf.mxu0
        %v422 = vadd.f32 %v330, %v421
        %423 = vmatmul.f32.gmra.mxu0 %v225
        %v424 = vpop.f32.mrf.mxu0
        %v425 = vadd.f32 %v333, %v424
        %426 = vmatmul.f32.gmra.mxu0 %v227
        %v427 = vpop.f32.mrf.mxu0
        %v428 = vadd.f32 %v336, %v427
        %429 = vmatmul.f32.gmra.mxu0 %v229
        %v430 = vpop.f32.mrf.mxu0
        %v431 = vadd.f32 %v339, %v430
        %432 = vmatmul.f32.gmra.mxu0 %v231
        %v433 = vpop.f32.mrf.mxu0
        %v434 = vadd.f32 %v342, %v433
        %435 = vmatmul.f32.gmra.mxu0 %v233
        %v436 = vpop.f32.mrf.mxu0
        %v437 = vadd.f32 %v345, %v436
        %438 = vmatmul.f32.gmra.mxu0 %v235
        %v439 = vpop.f32.mrf.mxu0
        %v440 = vadd.f32 %v348, %v439
        %441 = vmatmul.f32.gmra.mxu0 %v237
        %v442 = vpop.f32.mrf.mxu0
        %v443 = vadd.f32 %v351, %v442
        %444 = vmatmul.f32.gmra.mxu0 %v239
        %v445 = vpop.f32.mrf.mxu0
        %v446 = vadd.f32 %v354, %v445
        %447 = vmatmul.f32.gmra.mxu0 %v241
        %v448 = vpop.f32.mrf.mxu0
        %v449 = vadd.f32 %v357, %v448
        %450 = vmatmul.f32.gmra.mxu0 %v243
        %v451 = vpop.f32.mrf.mxu0
        %v452 = vadd.f32 %v360, %v451
        %453 = vmatmul.f32.gmra.mxu0 %v245
        %v454 = vpop.f32.mrf.mxu0
        %v455 = vadd.f32 %v363, %v454
        %456 = vmatmul.f32.gmra.mxu0 %v247
        %v457 = vpop.f32.mrf.mxu0
        %v458 = vadd.f32 %v366, %v457
        %459 = vmatmul.f32.gmra.mxu0 %v249
        %v460 = vpop.f32.mrf.mxu0
        %v461 = vadd.f32 %v369, %v460
        %462 = vmatmul.f32.gmra.mxu0 %v251
        %v463 = vpop.f32.mrf.mxu0
        %v464 = vadd.f32 %v372, %v463
        %465 = vmatmul.f32.gmra.mxu0 %v253
        %v466 = vpop.f32.mrf.mxu0
        %v467 = vadd.f32 %v375, %v466
        %468 = vmatmul.f32.gmra.mxu0 %v255
        %v469 = vpop.f32.mrf.mxu0
        %v470 = vadd.f32 %v378, %v469
        %471 = vdwg.mxu0
        %472 = vst [vmem:[%s205] sm:$0xff] %v398
        %473 = vst [vmem:[%s205 + $0x8] sm:$0xff] %v401
        %474 = vst [vmem:[%s205 + $0x10] sm:$0xff] %v404
        %475 = vst [vmem:[%s205 + $0x18] sm:$0xff] %v407
        %476 = vst [vmem:[%s205 + $0x20] sm:$0xff] %v410
        %477 = vst [vmem:[%s205 + $0x28] sm:$0xff] %v413
        %478 = vst [vmem:[%s205 + $0x30] sm:$0xff] %v416
        %479 = vst [vmem:[%s205 + $0x38] sm:$0xff] %v419
        %480 = vst [vmem:[%s205 + $0x40] sm:$0xff] %v422
        %481 = vst [vmem:[%s205 + $0x48] sm:$0xff] %v425
        %482 = vst [vmem:[%s205 + $0x50] sm:$0xff] %v428
        %483 = vst [vmem:[%s205 + $0x58] sm:$0xff] %v431
        %484 = vst [vmem:[%s205 + $0x60] sm:$0xff] %v434
        %485 = vst [vmem:[%s205 + $0x68] sm:$0xff] %v437
        %486 = vst [vmem:[%s205 + $0x70] sm:$0xff] %v440
        %487 = vst [vmem:[%s205 + $0x78] sm:$0xff] %v443
        %488 = vst [vmem:[%s205 + $0x80] sm:$0xff] %v446
        %489 = vst [vmem:[%s205 + $0x88] sm:$0xff] %v449
        %490 = vst [vmem:[%s205 + $0x90] sm:$0xff] %v452
        %491 = vst [vmem:[%s205 + $0x98] sm:$0xff] %v455
        %492 = vst [vmem:[%s205 + $0xa0] sm:$0xff] %v458
        %493 = vst [vmem:[%s205 + $0xa8] sm:$0xff] %v461
        %494 = vst [vmem:[%s205 + $0xb0] sm:$0xff] %v464
        %495 = vst [vmem:[%s205 + $0xb8] sm:$0xff] %v467
        %496 = vst [vmem:[%s205 + $0xc0] sm:$0xf] %v470
        %p497 = scmp.lt.s32.totalorder %s21, 1
        %s498 = scalar_select %p497, %s21, 1
        %p499 = scmp.lt.s32.totalorder %s22, 0
        %s500 = scalar_select %p499, %s22, 0
        %s501 = smul.addr %s498, 25
        %s502 = sadd.s32 %s500, %s501
        %s503 = smul.addr %s502, 8
        %s504 = scalar_lea.vmem %s2, %s503
        // Predicated region
        $region37: #{token_down_forward.1} parent=27 // pred_check
          %p505 = pneg %p98
        $region38: #{token_down_forward.1} parent=27 // pred_check_branch
          %507 = sbr.rel (%p505) target = $region40
        $region39: #{token_down_forward.1} parent=27 // pred_region
          _
        $region40: #{token_down_forward.1} parent=27 // pred_fallthru
          _
      $region28: #{token_down_forward.1} parent=5 // pred_fallthru
        _
      %p508 = scmp.le.s32.totalorder 2, %s12
      // Predicated region
      $region41: #{token_down_forward.1} parent=5 // pred_check
        %p509 = pneg %p508
      $region42: #{token_down_forward.1} parent=5 // pred_check_branch
        %511 = sbr.rel (%p509) target = $region44
      $region43: #{token_down_forward.1} parent=5 // pred_region
        %s512 = ssub.s32 %s12, 2
        // Predicated region
        $region45: #{token_down_forward.1} parent=43 // pred_check
          %p513 = pneg %p104
        $region46: #{token_down_forward.1} parent=43 // pred_check_branch
          %515 = sbr.rel (%p513) target = $region48
        $region47: #{token_down_forward.1} parent=43 // pred_region
          %p516 = scmp.lt.s32.totalorder %s23, 1
          %s517 = scalar_select %p516, %s23, 1
          %p518 = scmp.lt.s32.totalorder %s24, 0
          %s519 = scalar_select %p518, %s24, 0
          %s520 = smul.addr %s517, 25
          %s521 = sadd.s32 %s519, %s520
          %s522 = smul.addr %s521, 8
          %s523 = scalar_lea.vmem %s2, %s522
        $region48: #{token_down_forward.1} parent=43 // pred_fallthru
          _
      $region44: #{token_down_forward.1} parent=5 // pred_fallthru
        _
    $region6: #{token_down_forward.1} parent=1 // loop_footer
      %s16 = sadd.s32 1, %s12
    $region7: #{token_down_forward.1} parent=1 // loop_footer_branch
      %11 = sbr.rel target = $region3
    $region8: #{token_down_forward.1} parent=1 // loop_exit
      _
    %524 = vsyncpa [#allocation3], 1
    %s525 = scalar_lea.sflag [#allocation3], 1
    %526 = vsyncpa %s525, 1
    %527 = vsyncpa [#allocation5], 1
    %s528 = scalar_lea.sflag [#allocation5], 1
    %529 = vsyncpa %s528, 1

</llo_original>
